<compile_context>
chip_gen: v7x
topology: tpu7x:2x2x1
jax: 0.10.0
libtpu: 0.0.40
codegen_flags: <defaults>
</compile_context>

<pallas_src>
import functools

import jax
import jax.numpy as jnp
import numpy as np
from jax.experimental import pallas as pl
from jax.experimental.pallas import tpu as pltpu


def stacked_lstm_kernel(x_ref, h0_ref, c0_ref, w_ref, b_ref,
                        h1_ref, c1_ref, xh_ref):
    """One LSTMCell layer per grid step; input_feed carried in VMEM scratch.

    xh_ref : (B, Kx + H) f32 scratch = [input_feed ; h_0[l]] concat buffer.
    w_ref  : (1, Kx + H, 4H) per-layer [W_ih ; W_hh], streamed (bf16).
    """
    l = pl.program_id(0)
    H = h0_ref.shape[-1]
    Kx = xh_ref.shape[-1] - H
    in_size = x_ref.shape[-1]

    # Layer 0: seed the concat buffer with the (zero-padded) external input.
    @pl.when(l == 0)
    def _():
        if in_size < Kx:  # trace-time branch; only pad when input_size < hidden
            xh_ref[...] = jnp.zeros_like(xh_ref)
        xh_ref[:, :in_size] = x_ref[...].astype(xh_ref.dtype)

    # Put this layer's previous hidden state in the tail of the concat buffer.
    xh_ref[:, Kx:] = h0_ref[0].astype(xh_ref.dtype)

    # Single fused MXU pass: gates = [x_or_h ; h_l] @ [W_ih ; W_hh] + (b_ih+b_hh)
    gates = jnp.dot(xh_ref[...].astype(w_ref.dtype), w_ref[0],
                    preferred_element_type=jnp.float32)
    gates = gates + b_ref[0].astype(jnp.float32)

    i_g = jax.nn.sigmoid(gates[:, 0 * H:1 * H])
    f_g = jax.nn.sigmoid(gates[:, 1 * H:2 * H])
    g_g = jnp.tanh(gates[:, 2 * H:3 * H])
    o_g = jax.nn.sigmoid(gates[:, 3 * H:4 * H])

    # Cell state math stays in f32 across the recurrence.
    c_new = f_g * c0_ref[0].astype(jnp.float32) + i_g * g_g
    h_new = o_g * jnp.tanh(c_new)

    h1_ref[0] = h_new.astype(h1_ref.dtype)
    c1_ref[0] = c_new.astype(c1_ref.dtype)

    # Feed this layer's h into the head of the concat buffer for layer l+1.
    # TODO(synk): training-mode dropout on the inter-layer feed not implemented
    # (eval-mode nn.Dropout == identity).
    xh_ref[:, :H] = h_new.astype(xh_ref.dtype)


def stacked_lstm_step(x, h0, c0, w_cat, b_cat):
    """Fused forward: all layers in one pallas_call. Returns (h_1, c_1)."""
    L, B, H = h0.shape
    Kcat = w_cat.shape[1]

    grid_spec = pltpu.PrefetchScalarGridSpec(
        num_scalar_prefetch=0,
        grid=(L,),
        in_specs=[
            pl.BlockSpec((B, x.shape[-1]), lambda l: (0, 0)),     # x: VMEM-resident
            pl.BlockSpec((1, B, H), lambda l: (l, 0, 0)),         # h_0[l]
            pl.BlockSpec((1, B, H), lambda l: (l, 0, 0)),         # c_0[l]
            pl.BlockSpec((1, Kcat, 4 * H), lambda l: (l, 0, 0)),  # [W_ih;W_hh][l] streamed
            pl.BlockSpec((1, 1, 4 * H), lambda l: (l, 0, 0)),     # bias[l]
        ],
        out_specs=(
            pl.BlockSpec((1, B, H), lambda l: (l, 0, 0)),         # h_1[l]
            pl.BlockSpec((1, B, H), lambda l: (l, 0, 0)),         # c_1[l]
        ),
        scratch_shapes=[pltpu.VMEM((B, Kcat), jnp.float32)],      # input_feed carry
    )

    h1, c1 = pl.pallas_call(
        stacked_lstm_kernel,
        out_shape=(
            jax.ShapeDtypeStruct((L, B, H), h0.dtype),
            jax.ShapeDtypeStruct((L, B, H), c0.dtype),
        ),
        grid_spec=grid_spec,
        # In-place state update: h_0 -> h_1, c_0 -> c_1.
        input_output_aliases={1: 0, 2: 1},
        compiler_params=pltpu.CompilerParams(
            dimension_semantics=("arbitrary",)),   # layer chain is serial
    )(x, h0, c0, w_cat, b_cat)
    return h1, c1


class StackedLSTMPallas:
    """JAX/Pallas re-implementation of the PyTorch StackedLSTM forward pass."""

    def __init__(self, input_size, hidden_size, num_layers, dropout_p, key,
                 param_dtype=jnp.bfloat16):
        self.input_size = input_size
        self.hidden_size = hidden_size
        self.num_layers = num_layers
        self.dropout_p = dropout_p  # eval-mode identity here

        H = hidden_size
        Kx = max(input_size, H)          # head width of the [x ; h] concat
        Kcat = Kx + H
        stdv = 1.0 / (H ** 0.5)

        w_cat = jnp.zeros((num_layers, Kcat, 4 * H), jnp.float32)
        b_cat = jnp.zeros((num_layers, 1, 4 * H), jnp.float32)
        self.params_f32 = []             # per-layer f32 params for reference

        in_sz = input_size
        for l in range(num_layers):
            key, k1, k2, k3, k4 = jax.random.split(key, 5)
            # PyTorch stores (4H, in); pre-transpose to (in, 4H) for x @ W.
            w_ih = jax.random.uniform(k1, (in_sz, 4 * H), jnp.float32, -stdv, stdv)
            w_hh = jax.random.uniform(k2, (H, 4 * H), jnp.float32, -stdv, stdv)
            b_ih = jax.random.uniform(k3, (4 * H,), jnp.float32, -stdv, stdv)
            b_hh = jax.random.uniform(k4, (4 * H,), jnp.float32, -stdv, stdv)
            self.params_f32.append((w_ih, w_hh, b_ih + b_hh))
            w_cat = w_cat.at[l, :in_sz, :].set(w_ih)   # rows [in_sz:Kx] stay zero
            w_cat = w_cat.at[l, Kx:, :].set(w_hh)
            b_cat = b_cat.at[l, 0, :].set(b_ih + b_hh)
            in_sz = H

        self.w_cat = w_cat.astype(param_dtype)   # bf16 weights: half HBM/VMEM bytes
        self.b_cat = b_cat                       # bias stays f32 (tiny)

    @functools.partial(jax.jit, static_argnums=0)
    def __call__(self, input_feed, hidden):
        h_0, c_0 = hidden
        h_1, c_1 = stacked_lstm_step(input_feed, h_0, c_0, self.w_cat, self.b_cat)
        # Final input_feed == h of the last layer (dropout not applied after it).
        return h_1[-1], (h_1, c_1)


def reference_forward(x, h0, c0, params_f32):
    """Pure-JAX f32 reference matching torch StackedLSTM (eval mode)."""
    H = h0.shape[-1]
    inp = x
    h1, c1 = [], []
    for l, (w_ih, w_hh, b) in enumerate(params_f32):
        gates = inp @ w_ih + h0[l] @ w_hh + b
        i_g = jax.nn.sigmoid(gates[:, 0 * H:1 * H])
        f_g = jax.nn.sigmoid(gates[:, 1 * H:2 * H])
        g_g = jnp.tanh(gates[:, 2 * H:3 * H])
        o_g = jax.nn.sigmoid(gates[:, 3 * H:4 * H])
        c_n = f_g * c0[l] + i_g * g_g
        h_n = o_g * jnp.tanh(c_n)
        inp = h_n
        h1.append(h_n)
        c1.append(c_n)
    return inp, jnp.stack(h1), jnp.stack(c1)


if __name__ == "__main__":
    B = 8
    INPUT_SIZE = 32
    HIDDEN = 32
    NUM_LAYERS = 2
    DROPOUT_P = 0.1

    key = jax.random.PRNGKey(0)
    key, kx, kh, kc, kp = jax.random.split(key, 5)

    x = jax.random.normal(kx, (B, INPUT_SIZE), jnp.float32)
    h_0 = jax.random.normal(kh, (NUM_LAYERS, B, HIDDEN), jnp.float32)
    c_0 = jax.random.normal(kc, (NUM_LAYERS, B, HIDDEN), jnp.float32)

    model = StackedLSTMPallas(INPUT_SIZE, HIDDEN, NUM_LAYERS, DROPOUT_P, kp)

    out, (h_1, c_1) = model(x, (h_0, c_0))
    jax.block_until_ready((out, h_1, c_1))

    assert out.shape == (B, HIDDEN)
    assert h_1.shape == (NUM_LAYERS, B, HIDDEN)
    assert c_1.shape == (NUM_LAYERS, B, HIDDEN)

    # Numerical check vs an f32 pure-JAX reference (loose tol: bf16 weights).
    ref_out, ref_h1, ref_c1 = reference_forward(x, h_0, c_0, model.params_f32)
    np.testing.assert_allclose(np.asarray(out), np.asarray(ref_out),
                               rtol=2e-2, atol=2e-2)
    np.testing.assert_allclose(np.asarray(h_1), np.asarray(ref_h1),
                               rtol=2e-2, atol=2e-2)
    np.testing.assert_allclose(np.asarray(c_1), np.asarray(ref_c1),
                               rtol=2e-2, atol=2e-2)

    print("KERNEL_OK")
</pallas_src>

<mosaic_0001>
module attributes {stable_mosaic.version = 11 : i64} {
  func.func @stacked_lstm_kernel(%arg0: i32, %arg1: memref<8x32xf32, #tpu.memory_space<vmem>>, %arg2: memref<1x8x32xf32, #tpu.memory_space<vmem>>, %arg3: memref<1x8x32xf32, #tpu.memory_space<vmem>>, %arg4: memref<1x64x128xbf16, #tpu.memory_space<vmem>>, %arg5: memref<1x1x128xf32, #tpu.memory_space<vmem>>, %arg6: memref<1x8x32xf32, #tpu.memory_space<vmem>>, %arg7: memref<1x8x32xf32, #tpu.memory_space<vmem>>, %arg8: memref<8x64xf32, #tpu.memory_space<vmem>>) attributes {dimension_semantics = [#tpu.dimension_semantics<arbitrary>], iteration_bounds = array<i64: 2>, scalar_prefetch = 0 : i64, scratch_operands = 1 : i64, tpu.core_type = #tpu.core_type<tc>, window_params = [{pipeline_mode = #tpu.pipeline_mode<synchronous>, transform_indices = @transform_0, window_bounds = array<i64: 8, 32>}, {transform_indices = @transform_1, window_bounds = array<i64: 1, 8, 32>}, {transform_indices = @transform_2, window_bounds = array<i64: 1, 8, 32>}, {transform_indices = @transform_3, window_bounds = array<i64: 1, 64, 128>}, {transform_indices = @transform_4, window_bounds = array<i64: 1, 1, 128>}, {transform_indices = @transform_5, window_bounds = array<i64: 1, 8, 32>}, {transform_indices = @transform_6, window_bounds = array<i64: 1, 8, 32>}]} {
    %c0_i32 = arith.constant 0 : i32
    %0 = arith.cmpi eq, %arg0, %c0_i32 : i32
    %1 = arith.extui %0 : i1 to i32
    %c0_i32_0 = arith.constant 0 : i32
    %2 = arith.cmpi ne, %1, %c0_i32_0 : i32
    scf.if %2 {
      %c0_26 = arith.constant 0 : index
      %c0_27 = arith.constant 0 : index
      %49 = vector.load %arg1[%c0_26, %c0_27] : memref<8x32xf32, #tpu.memory_space<vmem>>, vector<8x32xf32>
      %c0_28 = arith.constant 0 : index
      %c0_29 = arith.constant 0 : index
      %50 = vector.load %arg8[%c0_28, %c0_29] : memref<8x64xf32, #tpu.memory_space<vmem>>, vector<8x32xf32>
      tpu.vector_store %arg8[%c0_28, %c0_29], %49 {strides = array<i32>} : memref<8x64xf32, #tpu.memory_space<vmem>>, vector<8x32xf32>,
    } else {
    }
    %c0 = arith.constant 0 : index
    %c0_1 = arith.constant 0 : index
    %c0_2 = arith.constant 0 : index
    %3 = vector.load %arg2[%c0, %c0_1, %c0_2] : memref<1x8x32xf32, #tpu.memory_space<vmem>>, vector<1x8x32xf32>
    %4 = vector.shape_cast %3 : vector<1x8x32xf32> to vector<8x32xf32>
    %c0_3 = arith.constant 0 : index
    %c32 = arith.constant 32 : index
    %5 = vector.load %arg8[%c0_3, %c32] : memref<8x64xf32, #tpu.memory_space<vmem>>, vector<8x32xf32>
    tpu.vector_store %arg8[%c0_3, %c32], %4 {strides = array<i32>} : memref<8x64xf32, #tpu.memory_space<vmem>>, vector<8x32xf32>,
    %c0_4 = arith.constant 0 : index
    %c0_5 = arith.constant 0 : index
    %6 = vector.load %arg8[%c0_4, %c0_5] : memref<8x64xf32, #tpu.memory_space<vmem>>, vector<8x64xf32>
    %7 = arith.truncf %6 : vector<8x64xf32> to vector<8x64xbf16>
    %c0_6 = arith.constant 0 : index
    %c0_7 = arith.constant 0 : index
    %c0_8 = arith.constant 0 : index
    %8 = vector.load %arg4[%c0_6, %c0_7, %c0_8] : memref<1x64x128xbf16, #tpu.memory_space<vmem>>, vector<1x64x128xbf16>
    %9 = vector.shape_cast %8 : vector<1x64x128xbf16> to vector<64x128xbf16>
    %cst = arith.constant dense<0.000000e+00> : vector<8x128xf32>
    %10 = tpu.matmul %7, %9, %cst {dimension_numbers = #tpu.dot_dimension_numbers<[1], [0], [0], [1], [0, 0, 1, 1], [], []>} : vector<8x64xbf16>, vector<64x128xbf16>, vector<8x128xf32> -> vector<8x128xf32>
    %c0_9 = arith.constant 0 : index
    %c0_10 = arith.constant 0 : index
    %c0_11 = arith.constant 0 : index
    %11 = vector.load %arg5[%c0_9, %c0_10, %c0_11] : memref<1x1x128xf32, #tpu.memory_space<vmem>>, vector<1x1x128xf32>
    %12 = vector.shape_cast %11 : vector<1x1x128xf32> to vector<1x128xf32>
    %13 = vector.broadcast %12 : vector<1x128xf32> to vector<8x128xf32>
    %14 = arith.addf %10, %13 : vector<8x128xf32>
    %15 = vector.extract_strided_slice %14 {offsets = [0, 0], sizes = [8, 32], strides = [1, 1]} : vector<8x128xf32> to vector<8x32xf32>
    %16 = arith.negf %15 : vector<8x32xf32>
    %17 = math.exp %16 : vector<8x32xf32>
    %cst_12 = arith.constant 1.000000e+00 : f32
    %18 = vector.broadcast %cst_12 : f32 to vector<8x32xf32>
    %19 = arith.addf %18, %17 : vector<8x32xf32>
    %20 = arith.divf %18, %19 : vector<8x32xf32>
    %21 = vector.extract_strided_slice %14 {offsets = [0, 32], sizes = [8, 32], strides = [1, 1]} : vector<8x128xf32> to vector<8x32xf32>
    %22 = arith.negf %21 : vector<8x32xf32>
    %23 = math.exp %22 : vector<8x32xf32>
    %cst_13 = arith.constant 1.000000e+00 : f32
    %24 = vector.broadcast %cst_13 : f32 to vector<8x32xf32>
    %25 = arith.addf %24, %23 : vector<8x32xf32>
    %26 = arith.divf %24, %25 : vector<8x32xf32>
    %27 = vector.extract_strided_slice %14 {offsets = [0, 64], sizes = [8, 32], strides = [1, 1]} : vector<8x128xf32> to vector<8x32xf32>
    %28 = math.tanh %27 : vector<8x32xf32>
    %29 = vector.extract_strided_slice %14 {offsets = [0, 96], sizes = [8, 32], strides = [1, 1]} : vector<8x128xf32> to vector<8x32xf32>
    %30 = arith.negf %29 : vector<8x32xf32>
    %31 = math.exp %30 : vector<8x32xf32>
    %cst_14 = arith.constant 1.000000e+00 : f32
    %32 = vector.broadcast %cst_14 : f32 to vector<8x32xf32>
    %33 = arith.addf %32, %31 : vector<8x32xf32>
    %34 = arith.divf %32, %33 : vector<8x32xf32>
    %c0_15 = arith.constant 0 : index
    %c0_16 = arith.constant 0 : index
    %c0_17 = arith.constant 0 : index
    %35 = vector.load %arg3[%c0_15, %c0_16, %c0_17] : memref<1x8x32xf32, #tpu.memory_space<vmem>>, vector<1x8x32xf32>
    %36 = vector.shape_cast %35 : vector<1x8x32xf32> to vector<8x32xf32>
    %37 = arith.mulf %26, %36 : vector<8x32xf32>
    %38 = arith.mulf %20, %28 : vector<8x32xf32>
    %39 = arith.addf %37, %38 : vector<8x32xf32>
    %40 = math.tanh %39 : vector<8x32xf32>
    %41 = arith.mulf %34, %40 : vector<8x32xf32>
    %c0_18 = arith.constant 0 : index
    %c0_19 = arith.constant 0 : index
    %c0_20 = arith.constant 0 : index
    %42 = vector.load %arg6[%c0_18, %c0_19, %c0_20] : memref<1x8x32xf32, #tpu.memory_space<vmem>>, vector<1x8x32xf32>
    %43 = vector.shape_cast %42 : vector<1x8x32xf32> to vector<8x32xf32>
    %44 = vector.shape_cast %41 : vector<8x32xf32> to vector<1x8x32xf32>
    tpu.vector_store %arg6[%c0_18, %c0_19, %c0_20], %44 {strides = array<i32>} : memref<1x8x32xf32, #tpu.memory_space<vmem>>, vector<1x8x32xf32>,
    %c0_21 = arith.constant 0 : index
    %c0_22 = arith.constant 0 : index
    %c0_23 = arith.constant 0 : index
    %45 = vector.load %arg7[%c0_21, %c0_22, %c0_23] : memref<1x8x32xf32, #tpu.memory_space<vmem>>, vector<1x8x32xf32>
    %46 = vector.shape_cast %45 : vector<1x8x32xf32> to vector<8x32xf32>
    %47 = vector.shape_cast %39 : vector<8x32xf32> to vector<1x8x32xf32>
    tpu.vector_store %arg7[%c0_21, %c0_22, %c0_23], %47 {strides = array<i32>} : memref<1x8x32xf32, #tpu.memory_space<vmem>>, vector<1x8x32xf32>,
    %c0_24 = arith.constant 0 : index
    %c0_25 = arith.constant 0 : index
    %48 = vector.load %arg8[%c0_24, %c0_25] : memref<8x64xf32, #tpu.memory_space<vmem>>, vector<8x32xf32>
    tpu.vector_store %arg8[%c0_24, %c0_25], %41 {strides = array<i32>} : memref<8x64xf32, #tpu.memory_space<vmem>>, vector<8x32xf32>,
    return
  }
  func.func @transform_0(%arg0: i32) -> (i32, i32) {
    %c0_i32 = arith.constant 0 : i32
    %c0_i32_0 = arith.constant 0 : i32
    %c0_i32_1 = arith.constant 0 : i32
    return %c0_i32, %c0_i32_0 : i32, i32
  }
  func.func @transform_1(%arg0: i32) -> (i32, i32, i32) {
    %c0_i32 = arith.constant 0 : i32
    %c0_i32_0 = arith.constant 0 : i32
    %c0_i32_1 = arith.constant 0 : i32
    return %arg0, %c0_i32, %c0_i32_0 : i32, i32, i32
  }
  func.func @transform_2(%arg0: i32) -> (i32, i32, i32) {
    %c0_i32 = arith.constant 0 : i32
    %c0_i32_0 = arith.constant 0 : i32
    %c0_i32_1 = arith.constant 0 : i32
    return %arg0, %c0_i32, %c0_i32_0 : i32, i32, i32
  }
  func.func @transform_3(%arg0: i32) -> (i32, i32, i32) {
    %c0_i32 = arith.constant 0 : i32
    %c0_i32_0 = arith.constant 0 : i32
    %c0_i32_1 = arith.constant 0 : i32
    return %arg0, %c0_i32, %c0_i32_0 : i32, i32, i32
  }
  func.func @transform_4(%arg0: i32) -> (i32, i32, i32) {
    %c0_i32 = arith.constant 0 : i32
    %c0_i32_0 = arith.constant 0 : i32
    %c0_i32_1 = arith.constant 0 : i32
    return %arg0, %c0_i32, %c0_i32_0 : i32, i32, i32
  }
  func.func @transform_5(%arg0: i32) -> (i32, i32, i32) {
    %c0_i32 = arith.constant 0 : i32
    %c0_i32_0 = arith.constant 0 : i32
    %c0_i32_1 = arith.constant 0 : i32
    return %arg0, %c0_i32, %c0_i32_0 : i32, i32, i32
  }
  func.func @transform_6(%arg0: i32) -> (i32, i32, i32) {
    %c0_i32 = arith.constant 0 : i32
    %c0_i32_0 = arith.constant 0 : i32
    %c0_i32_1 = arith.constant 0 : i32
    return %arg0, %c0_i32, %c0_i32_0 : i32, i32, i32
  }
}

</mosaic_0001>

<llo_original>
// kernel: a_call__.1
$region0: #{a_call__.1}
  #allocation0 [shape = 'u32[]', space=smem, size = 0x4, offset = 0x4, fixed_abs, tag = 'smem constant byte address 0x4 - core index']
  #allocation1 [shape = 'u32[144,128]{1,0:T(1,128)}', space=vmem, size = 0x12000, scoped, tag = 'internal scratch']
  #allocation2 [shape = 'f32[8,64]{1,0:T(8,128)}', space=vmem, size = 0x1000, scoped, tag = 'scratch operand']
  %s0 = inlined_call_operand.hbm [shape: f32[8,32], index: 0, kind: input, shape index: {}]
  %s1 = inlined_call_operand.vmem [shape: f32[2,8,32], index: 1, kind: input, shape index: {}, may-alias: {1,5}]
  %s2 = inlined_call_operand.vmem [shape: f32[2,8,32], index: 2, kind: input, shape index: {}, may-alias: {2,6}]
  %s3 = inlined_call_operand.vmem [shape: bf16[2,64,128], index: 3, kind: input, shape index: {}]
  %s4 = inlined_call_operand.vmem [shape: f32[2,1,128], index: 4, kind: input, shape index: {}]
  %s5 = inlined_call_operand.vmem [shape: f32[2,8,32], index: 5, kind: output, shape index: {0}, may-alias: {1,5}]
  %s6 = inlined_call_operand.vmem [shape: f32[2,8,32], index: 6, kind: output, shape index: {1}, may-alias: {2,6}]
  %7 = xla_tuple %s5, %s6
  %s8 = sld [smem:[#allocation0]]
  $region69: #{a_call__.1} parent=0
    _
  %s10 = ssub.s32 1, %s8
  %s11 = scalar_select 0, %s10, %s8
  $region1: #{a_call__.1} parent=0
    #allocation3 [shape = 'u8[4096]{0}', space=vmem, size = 0x1000, scoped, tag = 'input window, operand 0, single buffered']
    #allocation4 [shape = 's32[2]{0}', space=sflag, size = 0x8, scoped, tag = 'scoped memory for a_call__.1']
    %12 = vsyncpa [#allocation4], 0
    loop: start=0, step=1, limit=4
    $region2: #{a_call__.1} parent=1 // loop_pre_header
      _
    $region3: #{a_call__.1} parent=1 // loop_header
      %s14 = sphi 0, %s18
      %p15 = scmp.ge.s32.totalorder %s14, 4
      %s22 = sphi 0, %s22
      %s24 = sphi 0, %s22
      %s25 = sphi 0, %s24
      %s39 = sphi 0, %s25
      %s45 = sphi 0, %s47
      %s48 = sphi 0, %s45
      %s49 = sphi 0, %s48
      %s65 = sphi 0, %s49
      %s71 = sphi 0, %s73
      %s74 = sphi 0, %s71
      %s75 = sphi 0, %s74
      %s91 = sphi 0, %s75
      %s97 = sphi 0, %s99
      %s100 = sphi 0, %s97
      %s101 = sphi 0, %s100
      %s117 = sphi 0, %s101
      %s123 = sphi 0, %s125
      %s126 = sphi 0, %s123
      %s127 = sphi 0, %s126
      %s143 = sphi 0, %s127
      %s149 = sphi 0, %s151
      %s152 = sphi 0, %s149
      %s153 = sphi 0, %s152
      %s169 = sphi 0, %s153
      %s175 = sphi 0, %s177
      %s178 = sphi 0, %s175
      %s179 = sphi 0, %s178
      %s195 = sphi 0, %s179
    $region4: #{a_call__.1} parent=1 // loop_header_branch
      %17 = sbr.rel (%p15) target = $region8
    $region5: #{a_call__.1} parent=1 // loop_body
      %s19 = ssub.s32 %s14, 1
      %s20 = ssub.s32 %s14, 2
      %s21 = sadd.s32 %s14, 1
      %s23 = sadd.s32 %s22, 1
      %p26 = scmp.eq.s32.totalorder %s14, 1
      %p27 = scmp.ne.s32.totalorder %s22, %s24
      %p28 = scmp.eq.s32.totalorder %s14, 0
      %p29 = por %p27, %p28
      %p30 = scmp.ne.s32.totalorder %s22, %s24
      %p31 = scmp.eq.s32.totalorder %s19, 1
      %p32 = por %p30, %p31
      %p33 = scmp.ne.s32.totalorder %s24, %s25
      %p34 = scmp.eq.s32.totalorder %s19, 0
      %p35 = por %p33, %p34
      %p36 = scmp.ne.s32.totalorder %s24, %s25
      %p37 = scmp.eq.s32.totalorder %s20, 1
      %p38 = por %p36, %p37
      %p40 = scmp.ne.s32.totalorder %s25, %s39
      %p41 = scmp.eq.s32.totalorder %s20, 0
      %p42 = por %p40, %p41
      %s43 = ssub.s32 %s14, %s21
      %p44 = scmp.eq.s32.totalorder %s43, 0
      %s46 = sadd.s32 %s45, 1
      %s47 = scalar_select %p44, %s45, %s46
      %p50 = pneg %p44
      %p51 = scmp.eq.s32.totalorder %s14, 1
      %p52 = por %p50, %p51
      %p53 = scmp.ne.s32.totalorder %s45, %s48
      %p54 = scmp.eq.s32.totalorder %s14, 0
      %p55 = por %p53, %p54
      %p56 = scmp.ne.s32.totalorder %s45, %s48
      %p57 = scmp.eq.s32.totalorder %s19, 1
      %p58 = por %p56, %p57
      %p59 = scmp.ne.s32.totalorder %s48, %s49
      %p60 = scmp.eq.s32.totalorder %s19, 0
      %p61 = por %p59, %p60
      %p62 = scmp.ne.s32.totalorder %s48, %s49
      %p63 = scmp.eq.s32.totalorder %s20, 1
      %p64 = por %p62, %p63
      %p66 = scmp.ne.s32.totalorder %s49, %s65
      %p67 = scmp.eq.s32.totalorder %s20, 0
      %p68 = por %p66, %p67
      %s69 = ssub.s32 %s14, %s21
      %p70 = scmp.eq.s32.totalorder %s69, 0
      %s72 = sadd.s32 %s71, 1
      %s73 = scalar_select %p70, %s71, %s72
      %p76 = pneg %p70
      %p77 = scmp.eq.s32.totalorder %s14, 1
      %p78 = por %p76, %p77
      %p79 = scmp.ne.s32.totalorder %s71, %s74
      %p80 = scmp.eq.s32.totalorder %s14, 0
      %p81 = por %p79, %p80
      %p82 = scmp.ne.s32.totalorder %s71, %s74
      %p83 = scmp.eq.s32.totalorder %s19, 1
      %p84 = por %p82, %p83
      %p85 = scmp.ne.s32.totalorder %s74, %s75
      %p86 = scmp.eq.s32.totalorder %s19, 0
      %p87 = por %p85, %p86
      %p88 = scmp.ne.s32.totalorder %s74, %s75
      %p89 = scmp.eq.s32.totalorder %s20, 1
      %p90 = por %p88, %p89
      %p92 = scmp.ne.s32.totalorder %s75, %s91
      %p93 = scmp.eq.s32.totalorder %s20, 0
      %p94 = por %p92, %p93
      %s95 = ssub.s32 %s14, %s21
      %p96 = scmp.eq.s32.totalorder %s95, 0
      %s98 = sadd.s32 %s97, 1
      %s99 = scalar_select %p96, %s97, %s98
      %p102 = pneg %p96
      %p103 = scmp.eq.s32.totalorder %s14, 1
      %p104 = por %p102, %p103
      %p105 = scmp.ne.s32.totalorder %s97, %s100
      %p106 = scmp.eq.s32.totalorder %s14, 0
      %p107 = por %p105, %p106
      %p108 = scmp.ne.s32.totalorder %s97, %s100
      %p109 = scmp.eq.s32.totalorder %s19, 1
      %p110 = por %p108, %p109
      %p111 = scmp.ne.s32.totalorder %s100, %s101
      %p112 = scmp.eq.s32.totalorder %s19, 0
      %p113 = por %p111, %p112
      %p114 = scmp.ne.s32.totalorder %s100, %s101
      %p115 = scmp.eq.s32.totalorder %s20, 1
      %p116 = por %p114, %p115
      %p118 = scmp.ne.s32.totalorder %s101, %s117
      %p119 = scmp.eq.s32.totalorder %s20, 0
      %p120 = por %p118, %p119
      %s121 = ssub.s32 %s14, %s21
      %p122 = scmp.eq.s32.totalorder %s121, 0
      %s124 = sadd.s32 %s123, 1
      %s125 = scalar_select %p122, %s123, %s124
      %p128 = pneg %p122
      %p129 = scmp.eq.s32.totalorder %s14, 1
      %p130 = por %p128, %p129
      %p131 = scmp.ne.s32.totalorder %s123, %s126
      %p132 = scmp.eq.s32.totalorder %s14, 0
      %p133 = por %p131, %p132
      %p134 = scmp.ne.s32.totalorder %s123, %s126
      %p135 = scmp.eq.s32.totalorder %s19, 1
      %p136 = por %p134, %p135
      %p137 = scmp.ne.s32.totalorder %s126, %s127
      %p138 = scmp.eq.s32.totalorder %s19, 0
      %p139 = por %p137, %p138
      %p140 = scmp.ne.s32.totalorder %s126, %s127
      %p141 = scmp.eq.s32.totalorder %s20, 1
      %p142 = por %p140, %p141
      %p144 = scmp.ne.s32.totalorder %s127, %s143
      %p145 = scmp.eq.s32.totalorder %s20, 0
      %p146 = por %p144, %p145
      %s147 = ssub.s32 %s14, %s21
      %p148 = scmp.eq.s32.totalorder %s147, 0
      %s150 = sadd.s32 %s149, 1
      %s151 = scalar_select %p148, %s149, %s150
      %p154 = pneg %p148
      %p155 = scmp.eq.s32.totalorder %s14, 1
      %p156 = por %p154, %p155
      %p157 = scmp.ne.s32.totalorder %s149, %s152
      %p158 = scmp.eq.s32.totalorder %s14, 0
      %p159 = por %p157, %p158
      %p160 = scmp.ne.s32.totalorder %s149, %s152
      %p161 = scmp.eq.s32.totalorder %s19, 1
      %p162 = por %p160, %p161
      %p163 = scmp.ne.s32.totalorder %s152, %s153
      %p164 = scmp.eq.s32.totalorder %s19, 0
      %p165 = por %p163, %p164
      %p166 = scmp.ne.s32.totalorder %s152, %s153
      %p167 = scmp.eq.s32.totalorder %s20, 1
      %p168 = por %p166, %p167
      %p170 = scmp.ne.s32.totalorder %s153, %s169
      %p171 = scmp.eq.s32.totalorder %s20, 0
      %p172 = por %p170, %p171
      %s173 = ssub.s32 %s14, %s21
      %p174 = scmp.eq.s32.totalorder %s173, 0
      %s176 = sadd.s32 %s175, 1
      %s177 = scalar_select %p174, %s175, %s176
      %p180 = pneg %p174
      %p181 = scmp.eq.s32.totalorder %s14, 1
      %p182 = por %p180, %p181
      %p183 = scmp.ne.s32.totalorder %s175, %s178
      %p184 = scmp.eq.s32.totalorder %s14, 0
      %p185 = por %p183, %p184
      %p186 = scmp.ne.s32.totalorder %s175, %s178
      %p187 = scmp.eq.s32.totalorder %s19, 1
      %p188 = por %p186, %p187
      %p189 = scmp.ne.s32.totalorder %s178, %s179
      %p190 = scmp.eq.s32.totalorder %s19, 0
      %p191 = por %p189, %p190
      %p192 = scmp.ne.s32.totalorder %s178, %s179
      %p193 = scmp.eq.s32.totalorder %s20, 1
      %p194 = por %p192, %p193
      %p196 = scmp.ne.s32.totalorder %s179, %s195
      %p197 = scmp.eq.s32.totalorder %s20, 0
      %p198 = por %p196, %p197
      %p199 = scmp.le.s32.totalorder 1, %s14
      %p200 = scmp.lt.s32.totalorder %s14, 3
      %p201 = pnand %p199, %p200
      %p202 = pneg %p201
      // Predicated region
      $region9: #{a_call__.1} parent=5 // pred_check
        _
      $region10: #{a_call__.1} parent=5 // pred_check_branch
        %204 = sbr.rel (%p201) target = $region12
      $region11: #{a_call__.1} parent=5 // pred_region
        %s205 = ssub.s32 %s14, 1
        // Predicated region
        $region13: #{a_call__.1} parent=11 // pred_check
          %p206 = pneg %p35
        $region14: #{a_call__.1} parent=11 // pred_check_branch
          %208 = sbr.rel (%p206) target = $region16
        $region15: #{a_call__.1} parent=11 // pred_region
          %s210 = ssub.s32 128, 128
          %211 = vsyncadd [#allocation4], %s210
          %s213 = sshll.u32 [#allocation3], 4
          %s214 = int_to_ptr.vmem [resolvable:$true] %s213
          %216 = dma.hbm_to_vmem [thread:$0]  %s0, 128, %s214, [#allocation4]
        $region16: #{a_call__.1} parent=11 // pred_fallthru
          _
      $region12: #{a_call__.1} parent=5 // pred_fallthru
        _
      %p217 = scmp.lt.s32.totalorder %s14, 2
      // Predicated region
      $region17: #{a_call__.1} parent=5 // pred_check
        %p218 = pneg %p217
      $region18: #{a_call__.1} parent=5 // pred_check_branch
        %220 = sbr.rel (%p218) target = $region20
      $region19: #{a_call__.1} parent=5 // pred_region
        // Predicated region
        $region21: #{a_call__.1} parent=19 // pred_check
          %p221 = pneg %p55
        $region22: #{a_call__.1} parent=19 // pred_check_branch
          %223 = sbr.rel (%p221) target = $region24
        $region23: #{a_call__.1} parent=19 // pred_region
          %p224 = scmp.lt.s32.totalorder %s14, 1
          %s225 = scalar_select %p224, %s14, 1
          %s226 = smul.addr %s225, 8
          %s227 = scalar_lea.vmem %s1, %s226
        $region24: #{a_call__.1} parent=19 // pred_fallthru
          _
        // Predicated region
        $region25: #{a_call__.1} parent=19 // pred_check
          %p228 = pneg %p81
        $region26: #{a_call__.1} parent=19 // pred_check_branch
          %230 = sbr.rel (%p228) target = $region28
        $region27: #{a_call__.1} parent=19 // pred_region
          %p231 = scmp.lt.s32.totalorder %s14, 1
          %s232 = scalar_select %p231, %s14, 1
          %s233 = smul.addr %s232, 8
          %s234 = scalar_lea.vmem %s2, %s233
        $region28: #{a_call__.1} parent=19 // pred_fallthru
          _
        // Predicated region
        $region29: #{a_call__.1} parent=19 // pred_check
          %p235 = pneg %p107
        $region30: #{a_call__.1} parent=19 // pred_check_branch
          %237 = sbr.rel (%p235) target = $region32
        $region31: #{a_call__.1} parent=19 // pred_region
          %p238 = scmp.lt.s32.totalorder %s14, 1
          %s239 = scalar_select %p238, %s14, 1
          %s240 = smul.addr %s239, 8
          %s241 = smul.addr %s240, 4
          %s242 = scalar_lea.vmem %s3, %s241
        $region32: #{a_call__.1} parent=19 // pred_fallthru
          _
        // Predicated region
        $region33: #{a_call__.1} parent=19 // pred_check
          %p243 = pneg %p133
        $region34: #{a_call__.1} parent=19 // pred_check_branch
          %245 = sbr.rel (%p243) target = $region36
        $region35: #{a_call__.1} parent=19 // pred_region
          %p246 = scmp.lt.s32.totalorder %s14, 1
          %s247 = scalar_select %p246, %s14, 1
          %s248 = scalar_lea.vmem %s4, %s247
        $region36: #{a_call__.1} parent=19 // pred_fallthru
          _
      $region20: #{a_call__.1} parent=5 // pred_fallthru
        _
      %p249 = scmp.le.s32.totalorder 1, %s14
      %p250 = scmp.lt.s32.totalorder %s14, 3
      %p251 = pnand %p249, %p250
      %p252 = pneg %p251
      // Predicated region
      $region37: #{a_call__.1} parent=5 // pred_check
        _
      $region38: #{a_call__.1} parent=5 // pred_check_branch
        %254 = sbr.rel (%p251) target = $region40
      $region39: #{a_call__.1} parent=5 // pred_region
        %s255 = ssub.s32 %s14, 1
        // Predicated region
        $region41: #{a_call__.1} parent=39 // pred_check
          %p256 = pneg %p35
        $region42: #{a_call__.1} parent=39 // pred_check_branch
          %258 = sbr.rel (%p256) target = $region44
        $region43: #{a_call__.1} parent=39 // pred_region
          %259 = dma.done [#allocation4], 128
        $region44: #{a_call__.1} parent=39 // pred_fallthru
          _
        %p260 = pneg %p35
        %p261 = pneg %p32
        %p262 = scmp.lt.s32.totalorder %s19, 1
        %s263 = scalar_select %p262, %s19, 1
        %s264 = smul.addr %s263, 8
        %s265 = scalar_lea.vmem %s1, %s264
        %p266 = pneg %p61
        %p267 = pneg %p58
        %p268 = scmp.lt.s32.totalorder %s19, 1
        %s269 = scalar_select %p268, %s19, 1
        %s270 = smul.addr %s269, 8
        %s271 = scalar_lea.vmem %s2, %s270
        %p272 = pneg %p87
        %p273 = pneg %p84
        %p274 = scmp.lt.s32.totalorder %s19, 1
        %s275 = scalar_select %p274, %s19, 1
        %s276 = smul.addr %s275, 8
        %s277 = smul.addr %s276, 4
        %s278 = scalar_lea.vmem %s3, %s277
        %p279 = pneg %p113
        %p280 = pneg %p110
        %p281 = scmp.lt.s32.totalorder %s19, 1
        %s282 = scalar_select %p281, %s19, 1
        %s283 = scalar_lea.vmem %s4, %s282
        %p284 = pneg %p139
        %p285 = pneg %p136
        %p286 = pneg %p165
        %p287 = pneg %p162
        %p288 = scmp.lt.s32.totalorder %s19, 1
        %s289 = scalar_select %p288, %s19, 1
        %s290 = smul.addr %s289, 8
        %s291 = scalar_lea.vmem %s5, %s290
        %p292 = pneg %p191
        %p293 = pneg %p188
        %p294 = scmp.lt.s32.totalorder %s19, 1
        %s295 = scalar_select %p294, %s19, 1
        %s296 = smul.addr %s295, 8
        %s297 = scalar_lea.vmem %s6, %s296
        %p298 = scmp.lt.s32.totalorder %s19, 1
        %s299 = scalar_select %p298, %s19, 1
        %s300 = smul.addr %s299, 8
        %s301 = scalar_lea.vmem %s1, %s300
        %p302 = scmp.lt.s32.totalorder %s19, 1
        %s303 = scalar_select %p302, %s19, 1
        %s304 = smul.addr %s303, 8
        %s305 = scalar_lea.vmem %s2, %s304
        %p306 = scmp.lt.s32.totalorder %s19, 1
        %s307 = scalar_select %p306, %s19, 1
        %s308 = smul.addr %s307, 8
        %s309 = smul.addr %s308, 4
        %s310 = scalar_lea.vmem %s3, %s309
        %p311 = scmp.lt.s32.totalorder %s19, 1
        %s312 = scalar_select %p311, %s19, 1
        %s313 = scalar_lea.vmem %s4, %s312
        %p314 = scmp.lt.s32.totalorder %s19, 1
        %s315 = scalar_select %p314, %s19, 1
        %s316 = smul.addr %s315, 8
        %s317 = scalar_lea.vmem %s5, %s316
        %p318 = scmp.lt.s32.totalorder %s19, 1
        %s319 = scalar_select %p318, %s19, 1
        %s320 = smul.addr %s319, 8
        %s321 = scalar_lea.vmem %s6, %s320
        %p323 = scmp.eq.s32.totalorder %s19, 0
        // Predicated region
        $region45: #{a_call__.1} parent=39 // pred_check
          %p324 = pneg %p323
        $region46: #{a_call__.1} parent=39 // pred_check_branch
          %326 = sbr.rel (%p324) target = $region48
        $region47: #{a_call__.1} parent=39 // pred_region
          %v327 = vld [vmem:[#allocation3] sm:$0xff]
          %vm328 = vcmask 261120
          %329 = vst.msk [vmem:[#allocation2] sm:$0xff] %vm328, %v327
        $region48: #{a_call__.1} parent=39 // pred_fallthru
          _
        %v330 = vld [vmem:[%s301] sm:$0xff]
        %332 = vrot.lane.b32.xlu0 %v330, 32
        %v333 = vpop.permute.xlu0 %332
        %vm335 = vcmask 523520
        %336 = vst.msk [vmem:[#allocation2] sm:$0xff] %vm335, %v333
        %v337 = vld [vmem:[#allocation2] sm:$0xff]
        %v338 = vpack.c.bf16 %v337, %v337
        %v339 = vld [vmem:[%s310] sm:$0xf]
        %v340 = vld [vmem:[%s310 + $0x4] sm:$0xf]
        %v341 = vld [vmem:[%s310 + $0x8] sm:$0xf]
        %v342 = vld [vmem:[%s310 + $0xc] sm:$0xf]
        %v343 = vld [vmem:[%s310 + $0x10] sm:$0xf]
        %v344 = vld [vmem:[%s310 + $0x14] sm:$0xf]
        %v345 = vld [vmem:[%s310 + $0x18] sm:$0xf]
        %v346 = vld [vmem:[%s310 + $0x1c] sm:$0xf]
        %v347 = vld [vmem:[%s313] sm:$0x1]
        %v349 = vlaneseq
        %v350 = vshrl.u32 %v349, 7
        %v351 = vsub.s32 0, %v350
        %v352 = vrot.slane %v347, %v351
        %v362 = vunpack.c.l.b16 %v339
        %v363 = vunpack.c.l.b16 %v340
        %v364 = vunpack.c.l.b16 %v341
        %v365 = vunpack.c.l.b16 %v342
        %v366 = vunpack.c.l.b16 %v343
        %v367 = vunpack.c.l.b16 %v344
        %v368 = vunpack.c.l.b16 %v345
        %v369 = vunpack.c.l.b16 %v346
        %v370 = vpack.c.b16 %v363, %v362
        %v371 = vpack.c.b16 %v365, %v364
        %v372 = vpack.c.b16 %v367, %v366
        %v373 = vpack.c.b16 %v369, %v368
        %vm378 = vcmask 523264
        %v380 = vsel %vm378, %v338, 0
        %382 = vmatprep.subr.bf16.mxu0 0
        %383 = vmatpush1.bf16.msra.mxu0 %v370
        %384 = vmatprep.subr.bf16.mxu0 0
        %385 = vmatpush1.bf16.msra.mxu0 %v371
        %386 = vmatprep.subr.bf16.mxu0 0
        %387 = vmatpush1.bf16.msra.mxu0 %v372
        %388 = vmatprep.subr.bf16.mxu0 0
        %389 = vmatpush1.bf16.msra.mxu0 %v373
        %390 = vmatprep.subr.bf16.mxu0 0
        %391 = vmatpush1.bf16.msra.mxu0 0
        %392 = vmatprep.subr.bf16.mxu0 0
        %393 = vmatpush1.bf16.msra.mxu0 0
        %394 = vmatprep.subr.bf16.mxu0 0
        %395 = vmatpush1.bf16.msra.mxu0 0
        %396 = vmatprep.subr.bf16.mxu0 0
        %397 = vmatpush1.bf16.msra.mxu0 0
        %398 = vmatprep.subr.bf16.mxu0 0
        %399 = vmatpush1.bf16.msra.mxu0 0
        %400 = vmatprep.subr.bf16.mxu0 0
        %401 = vmatpush1.bf16.msra.mxu0 0
        %402 = vmatprep.subr.bf16.mxu0 0
        %403 = vmatpush1.bf16.msra.mxu0 0
        %404 = vmatprep.subr.bf16.mxu0 0
        %405 = vmatpush1.bf16.msra.mxu0 0
        %406 = vmatprep.subr.bf16.mxu0 0
        %407 = vmatpush1.bf16.msra.mxu0 0
        %408 = vmatprep.subr.bf16.mxu0 0
        %409 = vmatpush1.bf16.msra.mxu0 0
        %410 = vmatprep.subr.bf16.mxu0 0
        %411 = vmatpush1.bf16.msra.mxu0 0
        %412 = vmatprep.subr.bf16.mxu0 0
        %413 = vmatpush1.bf16.msra.mxu0 0
        %414 = vmatprep.mubr.bf16.mxu0 0
        %415 = vmatmul.mubr.bf16.gmra.mrb[0].mxu0 %v380
        %v416 = vpop.f32.mrb[0].mxu0
        %v417 = vadd.f32 %v352, %v416
        %v418 = vpop.f32.mrb[0].mxu0
        %v419 = vpop.f32.mrb[0].mxu0
        %v420 = vpop.f32.mrb[0].mxu0
        %421 = vdwg.mxu0
        %v422 = vxor.u32 %v417, 2147483648
        %v423 = vmul.f32 %v422, 1.442695
        %v424 = vpow.pop %v423
        %v425 = vadd.f32 %v424, 1.0
        %v426 = vrcp.pop %v425
        %v427 = vmul.f32 1.0, %v426
        %v428 = vtanh.pop %v417
        %v429 = vld [vmem:[%s305] sm:$0xff]
        %431 = vrot.lane.b32.xlu0 %v429, 32
        %v432 = vpop.permute.xlu0 %431
        %v434 = vmul.f32 %v427, %v432
        %436 = vrot.lane.b32.xlu0 %v428, 64
        %v437 = vpop.permute.xlu0 %436
        %v439 = vmul.f32 %v427, %v437
        %441 = vrot.lane.b32.xlu0 %v439, 32
        %v442 = vpop.permute.xlu0 %441
        %v444 = vadd.f32 %v434, %v442
        %v445 = vtanh.pop %v444
        %447 = vrot.lane.b32.xlu0 %v445, 64
        %v448 = vpop.permute.xlu0 %447
        %v450 = vmul.f32 %v427, %v448
        %452 = vrot.lane.b32.xlu0 %v450, 32
        %v453 = vpop.permute.xlu0 %452
        %vm455 = vcmask 261120
        %456 = vst.msk [vmem:[%s317] sm:$0xff] %vm455, %v453
        %458 = vrot.lane.b32.xlu0 %v444, 96
        %v459 = vpop.permute.xlu0 %458
        %461 = vst.msk [vmem:[%s321] sm:$0xff] %vm455, %v459
        %462 = vst.msk [vmem:[#allocation2] sm:$0xff] %vm455, %v453
        %p463 = scmp.lt.s32.totalorder %s19, 1
        %s464 = scalar_select %p463, %s19, 1
        %s465 = smul.addr %s464, 8
        %s466 = scalar_lea.vmem %s5, %s465
        %p467 = scmp.lt.s32.totalorder %s19, 1
        %s468 = scalar_select %p467, %s19, 1
        %s469 = smul.addr %s468, 8
        %s470 = scalar_lea.vmem %s6, %s469
        // Predicated region
        $region49: #{a_call__.1} parent=39 // pred_check
          %p471 = pneg %p162
        $region50: #{a_call__.1} parent=39 // pred_check_branch
          %473 = sbr.rel (%p471) target = $region52
        $region51: #{a_call__.1} parent=39 // pred_region
          _
        $region52: #{a_call__.1} parent=39 // pred_fallthru
          _
        // Predicated region
        $region53: #{a_call__.1} parent=39 // pred_check
          %p474 = pneg %p188
        $region54: #{a_call__.1} parent=39 // pred_check_branch
          %476 = sbr.rel (%p474) target = $region56
        $region55: #{a_call__.1} parent=39 // pred_region
          _
        $region56: #{a_call__.1} parent=39 // pred_fallthru
          _
      $region40: #{a_call__.1} parent=5 // pred_fallthru
        _
      %p477 = scmp.le.s32.totalorder 2, %s14
      // Predicated region
      $region57: #{a_call__.1} parent=5 // pred_check
        %p478 = pneg %p477
      $region58: #{a_call__.1} parent=5 // pred_check_branch
        %480 = sbr.rel (%p478) target = $region60
      $region59: #{a_call__.1} parent=5 // pred_region
        %s481 = ssub.s32 %s14, 2
        // Predicated region
        $region61: #{a_call__.1} parent=59 // pred_check
          %p482 = pneg %p168
        $region62: #{a_call__.1} parent=59 // pred_check_branch
          %484 = sbr.rel (%p482) target = $region64
        $region63: #{a_call__.1} parent=59 // pred_region
          %p485 = scmp.lt.s32.totalorder %s20, 1
          %s486 = scalar_select %p485, %s20, 1
          %s487 = smul.addr %s486, 8
          %s488 = scalar_lea.vmem %s5, %s487
        $region64: #{a_call__.1} parent=59 // pred_fallthru
          _
        // Predicated region
        $region65: #{a_call__.1} parent=59 // pred_check
          %p489 = pneg %p194
        $region66: #{a_call__.1} parent=59 // pred_check_branch
          %491 = sbr.rel (%p489) target = $region68
        $region67: #{a_call__.1} parent=59 // pred_region
          %p492 = scmp.lt.s32.totalorder %s20, 1
          %s493 = scalar_select %p492, %s20, 1
          %s494 = smul.addr %s493, 8
          %s495 = scalar_lea.vmem %s6, %s494
        $region68: #{a_call__.1} parent=59 // pred_fallthru
          _
      $region60: #{a_call__.1} parent=5 // pred_fallthru
        _
    $region6: #{a_call__.1} parent=1 // loop_footer
      %s18 = sadd.s32 1, %s14
    $region7: #{a_call__.1} parent=1 // loop_footer_branch
      %13 = sbr.rel target = $region3
    $region8: #{a_call__.1} parent=1 // loop_exit
      _
    %496 = vsyncpa [#allocation4], 1
    %s497 = scalar_lea.sflag [#allocation4], 1
    %498 = vsyncpa %s497, 1

</llo_original>
